<compile_context>
chip_gen: v6e
topology: v6e:2x2x1
jax: 0.10.0
libtpu: 0.0.40
codegen_flags: <defaults>
</compile_context>

<pallas_src>
import functools

import jax
import jax.numpy as jnp
from jax.experimental import pallas as pl
from jax.experimental.pallas import tpu as pltpu

LANE = 128   # vreg lane width


def _round_up(x, m):
    return (x + m - 1) // m * m


def mlp_kernel(x_ref, w1_ref, b1_ref, w2_ref, b2_ref, o_ref):
    # hidden = relu(x @ W1 + b1): MXU matmul with f32 accumulation,
    # bias add + ReLU on the VPU in f32.
    h = jnp.dot(x_ref[...], w1_ref[...], preferred_element_type=jnp.float32)
    h = jnp.maximum(h + b1_ref[...], 0.0)
    # out = hidden @ W2 + b2
    out = jnp.dot(h.astype(w2_ref.dtype), w2_ref[...],
                  preferred_element_type=jnp.float32)
    o_ref[...] = (out + b2_ref[...]).astype(o_ref.dtype)


def prepare_params(w1, b1, w2, b2, *, use_bf16):
    """One-time parameter prep: pad hidden to 128 lanes, cast weights.

    w1: [obs_size, hidden]   b1: [hidden] or [1, hidden]
    w2: [hidden, n_actions]  b2: [n_actions] or [1, n_actions]

    Padding the hidden dim with zero columns/rows is numerically inert
    (zeros through bias-add, ReLU and the second matmul). The output dim
    (n_actions) is deliberately NOT padded.
    """
    obs_size, hidden = w1.shape
    n_actions = w2.shape[1]
    hidden_p = _round_up(hidden, LANE)
    cdt = jnp.bfloat16 if use_bf16 else jnp.float32

    w1p = jnp.zeros((obs_size, hidden_p), cdt).at[:, :hidden].set(w1.astype(cdt))
    b1p = jnp.zeros((1, hidden_p), jnp.float32).at[:, :hidden].set(
        jnp.asarray(b1, jnp.float32).reshape(1, -1))
    w2p = jnp.zeros((hidden_p, n_actions), cdt).at[:hidden, :].set(w2.astype(cdt))
    b2p = jnp.asarray(b2, jnp.float32).reshape(1, n_actions)
    return w1p, b1p, w2p, b2p


def _choose_tile(batch, block_m, row_align):
    """Pick the batch tile size.

    - single tile (== batch) for tiny batches,
    - otherwise >= 2 grid steps so v7x's two TensorCores both get work,
    - rounded to row_align (16 for bf16 sublane packing),
    - sized from cdiv(batch, n_steps) so batch just above a tile multiple
      does not nearly double the work.
    """
    if batch < 2 * row_align:
        return batch
    n_steps = max(2, pl.cdiv(batch, block_m))
    tm = _round_up(pl.cdiv(batch, n_steps), row_align)
    return min(tm, _round_up(batch, row_align))


def net_forward(x, w1p, b1p, w2p, b2p, *, block_m=512, out_dtype=jnp.float32):
    """Forward pass of Net: relu(x @ W1 + b1) @ W2 + b2.

    x: [batch, obs_size]; params come from prepare_params().
    Returns [batch, n_actions] in out_dtype (default float32).
    """
    batch, obs_size = x.shape
    hidden_p = w1p.shape[1]
    n_actions = w2p.shape[1]
    compute_dtype = w1p.dtype
    row_align = 16 if compute_dtype == jnp.bfloat16 else 8

    # Cast activations first so any batch-pad copy moves half the bytes.
    xc = x.astype(compute_dtype)

    tm = _choose_tile(batch, block_m, row_align)
    grid_m = pl.cdiv(batch, tm)
    batch_p = grid_m * tm
    if batch_p != batch:   # only materialize a padded copy when needed
        xc = jnp.zeros((batch_p, obs_size), compute_dtype).at[:batch].set(xc)

    w_itemsize = jnp.dtype(compute_dtype).itemsize
    out_itemsize = jnp.dtype(out_dtype).itemsize
    cost = pl.CostEstimate(
        flops=2 * batch_p * (obs_size * hidden_p + hidden_p * n_actions),
        transcendentals=0,
        bytes_accessed=(batch_p * obs_size * w_itemsize       # x
                        + obs_size * hidden_p * w_itemsize    # W1
                        + hidden_p * n_actions * w_itemsize   # W2
                        + (hidden_p + n_actions) * 4          # biases
                        + batch_p * n_actions * out_itemsize),  # out
    )

    out = pl.pallas_call(
        mlp_kernel,
        out_shape=jax.ShapeDtypeStruct((batch_p, n_actions), out_dtype),
        grid=(grid_m,),
        in_specs=[
            # activation stream: one (tm, obs_size) tile per grid step
            pl.BlockSpec((tm, obs_size), lambda i: (i, 0)),
            # weights/biases: same block every step -> stay VMEM-resident
            pl.BlockSpec((obs_size, hidden_p), lambda i: (0, 0)),
            pl.BlockSpec((1, hidden_p), lambda i: (0, 0)),
            pl.BlockSpec((hidden_p, n_actions), lambda i: (0, 0)),
            pl.BlockSpec((1, n_actions), lambda i: (0, 0)),
        ],
        # Output keeps the true n_actions width (last dim == full array dim):
        # masked vst, but ~8x fewer HBM write bytes than the padded version.
        out_specs=pl.BlockSpec((tm, n_actions), lambda i: (i, 0)),
        compiler_params=pltpu.CompilerParams(
            dimension_semantics=("parallel",),
            vmem_limit_bytes=32 * 1024 * 1024),
        cost_estimate=cost,
    )(xc, w1p, b1p, w2p, b2p)

    if batch_p != batch:
        out = out[:batch]
    return out


def init_params(key, obs_size, hidden_size, n_actions):
    """Mirror torch.nn.Linear init: U(-1/sqrt(fan_in), 1/sqrt(fan_in))."""
    k1, k2, k3, k4 = jax.random.split(key, 4)
    bound1 = 1.0 / jnp.sqrt(obs_size)
    bound2 = 1.0 / jnp.sqrt(hidden_size)
    w1 = jax.random.uniform(k1, (obs_size, hidden_size), jnp.float32, -bound1, bound1)
    b1 = jax.random.uniform(k2, (1, hidden_size), jnp.float32, -bound1, bound1)
    w2 = jax.random.uniform(k3, (hidden_size, n_actions), jnp.float32, -bound2, bound2)
    b2 = jax.random.uniform(k4, (1, n_actions), jnp.float32, -bound2, bound2)
    return w1, b1, w2, b2


if __name__ == "__main__":
    # Small shapes consistent with the module's forward (batch of observations).
    batch, obs_size, hidden_size, n_actions = 8, 32, 64, 16

    key = jax.random.PRNGKey(0)
    kx, kp = jax.random.split(key)
    x = jax.random.normal(kx, (batch, obs_size), jnp.float32)
    w1, b1, w2, b2 = init_params(kp, obs_size, hidden_size, n_actions)

    # Pure-JAX reference.
    ref = jnp.maximum(x @ w1 + b1, 0.0) @ w2 + b2

    # f32 path: strict check (explicit caller choice of compute dtype).
    p_f32 = prepare_params(w1, b1, w2, b2, use_bf16=False)
    fwd = jax.jit(functools.partial(net_forward, block_m=512))
    out_f32 = jax.block_until_ready(fwd(x, *p_f32))
    assert out_f32.shape == (batch, n_actions)
    assert jnp.allclose(out_f32, ref, atol=1e-5, rtol=1e-5)

    # bf16 MXU path: looser tolerance for the lower-precision matmuls.
    p_bf16 = prepare_params(w1, b1, w2, b2, use_bf16=True)
    out_bf16 = jax.block_until_ready(fwd(x, *p_bf16))
    assert out_bf16.shape == (batch, n_actions)
    assert jnp.allclose(out_bf16, ref, atol=5e-2, rtol=5e-2)

    # Exercise the multi-tile / batch-padding path once (batch not a tile
    # multiple, >= 2 grid steps).
    big = 100
    xb = jax.random.normal(kx, (big, obs_size), jnp.float32)
    refb = jnp.maximum(xb @ w1 + b1, 0.0) @ w2 + b2
    out_big = jax.block_until_ready(fwd(xb, *p_f32))
    assert out_big.shape == (big, n_actions)
    assert jnp.allclose(out_big, refb, atol=1e-5, rtol=1e-5)

    print("KERNEL_OK")
</pallas_src>

<mosaic_0001>
module attributes {stable_mosaic.version = 11 : i64} {
  func.func @mlp_kernel(%arg0: i32, %arg1: memref<8x32xf32, #tpu.memory_space<vmem>>, %arg2: memref<32x128xf32, #tpu.memory_space<vmem>>, %arg3: memref<1x128xf32, #tpu.memory_space<vmem>>, %arg4: memref<128x16xf32, #tpu.memory_space<vmem>>, %arg5: memref<1x16xf32, #tpu.memory_space<vmem>>, %arg6: memref<8x16xf32, #tpu.memory_space<vmem>>) attributes {dimension_semantics = [#tpu.dimension_semantics<parallel>], iteration_bounds = array<i64: 1>, scalar_prefetch = 0 : i64, scratch_operands = 0 : i64, tpu.core_type = #tpu.core_type<tc>, window_params = [{transform_indices = @transform_0, window_bounds = array<i64: 8, 32>}, {pipeline_mode = #tpu.pipeline_mode<synchronous>, transform_indices = @transform_1, window_bounds = array<i64: 32, 128>}, {pipeline_mode = #tpu.pipeline_mode<synchronous>, transform_indices = @transform_2, window_bounds = array<i64: 1, 128>}, {pipeline_mode = #tpu.pipeline_mode<synchronous>, transform_indices = @transform_3, window_bounds = array<i64: 128, 16>}, {pipeline_mode = #tpu.pipeline_mode<synchronous>, transform_indices = @transform_4, window_bounds = array<i64: 1, 16>}, {transform_indices = @transform_5, window_bounds = array<i64: 8, 16>}]} {
    %c0 = arith.constant 0 : index
    %c0_0 = arith.constant 0 : index
    %0 = vector.load %arg1[%c0, %c0_0] : memref<8x32xf32, #tpu.memory_space<vmem>>, vector<8x32xf32>
    %c0_1 = arith.constant 0 : index
    %c0_2 = arith.constant 0 : index
    %1 = vector.load %arg2[%c0_1, %c0_2] : memref<32x128xf32, #tpu.memory_space<vmem>>, vector<32x128xf32>
    %cst = arith.constant dense<0.000000e+00> : vector<8x128xf32>
    %2 = tpu.matmul %0, %1, %cst {dimension_numbers = #tpu.dot_dimension_numbers<[1], [0], [0], [1], [0, 0, 1, 1], [], []>} : vector<8x32xf32>, vector<32x128xf32>, vector<8x128xf32> -> vector<8x128xf32>
    %c0_3 = arith.constant 0 : index
    %c0_4 = arith.constant 0 : index
    %3 = vector.load %arg3[%c0_3, %c0_4] : memref<1x128xf32, #tpu.memory_space<vmem>>, vector<1x128xf32>
    %4 = vector.broadcast %3 : vector<1x128xf32> to vector<8x128xf32>
    %5 = arith.addf %2, %4 : vector<8x128xf32>
    %cst_5 = arith.constant 0.000000e+00 : f32
    %6 = vector.broadcast %cst_5 : f32 to vector<8x128xf32>
    %7 = arith.maximumf %5, %6 : vector<8x128xf32>
    %c0_6 = arith.constant 0 : index
    %c0_7 = arith.constant 0 : index
    %8 = vector.load %arg4[%c0_6, %c0_7] : memref<128x16xf32, #tpu.memory_space<vmem>>, vector<128x16xf32>
    %cst_8 = arith.constant dense<0.000000e+00> : vector<8x16xf32>
    %9 = tpu.matmul %7, %8, %cst_8 {dimension_numbers = #tpu.dot_dimension_numbers<[1], [0], [0], [1], [0, 0, 1, 1], [], []>} : vector<8x128xf32>, vector<128x16xf32>, vector<8x16xf32> -> vector<8x16xf32>
    %c0_9 = arith.constant 0 : index
    %c0_10 = arith.constant 0 : index
    %10 = vector.load %arg5[%c0_9, %c0_10] : memref<1x16xf32, #tpu.memory_space<vmem>>, vector<1x16xf32>
    %11 = vector.broadcast %10 : vector<1x16xf32> to vector<8x16xf32>
    %12 = arith.addf %9, %11 : vector<8x16xf32>
    %c0_11 = arith.constant 0 : index
    %c0_12 = arith.constant 0 : index
    %13 = vector.load %arg6[%c0_11, %c0_12] : memref<8x16xf32, #tpu.memory_space<vmem>>, vector<8x16xf32>
    tpu.vector_store %arg6[%c0_11, %c0_12], %12 {strides = array<i32>} : memref<8x16xf32, #tpu.memory_space<vmem>>, vector<8x16xf32>,
    return
  }
  func.func @transform_0(%arg0: i32) -> (i32, i32) {
    %c0_i32 = arith.constant 0 : i32
    %c0_i32_0 = arith.constant 0 : i32
    return %arg0, %c0_i32 : i32, i32
  }
  func.func @transform_1(%arg0: i32) -> (i32, i32) {
    %c0_i32 = arith.constant 0 : i32
    %c0_i32_0 = arith.constant 0 : i32
    %c0_i32_1 = arith.constant 0 : i32
    return %c0_i32, %c0_i32_0 : i32, i32
  }
  func.func @transform_2(%arg0: i32) -> (i32, i32) {
    %c0_i32 = arith.constant 0 : i32
    %c0_i32_0 = arith.constant 0 : i32
    %c0_i32_1 = arith.constant 0 : i32
    return %c0_i32, %c0_i32_0 : i32, i32
  }
  func.func @transform_3(%arg0: i32) -> (i32, i32) {
    %c0_i32 = arith.constant 0 : i32
    %c0_i32_0 = arith.constant 0 : i32
    %c0_i32_1 = arith.constant 0 : i32
    return %c0_i32, %c0_i32_0 : i32, i32
  }
  func.func @transform_4(%arg0: i32) -> (i32, i32) {
    %c0_i32 = arith.constant 0 : i32
    %c0_i32_0 = arith.constant 0 : i32
    %c0_i32_1 = arith.constant 0 : i32
    return %c0_i32, %c0_i32_0 : i32, i32
  }
  func.func @transform_5(%arg0: i32) -> (i32, i32) {
    %c0_i32 = arith.constant 0 : i32
    %c0_i32_0 = arith.constant 0 : i32
    return %arg0, %c0_i32 : i32, i32
  }
}

</mosaic_0001>

<llo_original>
// kernel: net_forward.1
$region0: #{net_forward.1}
  #allocation0 [shape = 'u32[]', space=smem, size = 0x4, offset = 0x4, fixed_abs, tag = 'smem constant byte address 0x4 - core index']
  #allocation1 [shape = 'u32[144,128]{1,0:T(1,128)}', space=vmem, size = 0x12000, scoped, tag = 'internal scratch']
  %s0 = inlined_call_operand.vmem [shape: f32[8,32], index: 0, kind: input, shape index: {}]
  %s1 = inlined_call_operand.vmem [shape: f32[32,128], index: 1, kind: input, shape index: {}]
  %s2 = inlined_call_operand.vmem [shape: f32[1,128], index: 2, kind: input, shape index: {}]
  %s3 = inlined_call_operand.vmem [shape: f32[128,16], index: 3, kind: input, shape index: {}]
  %s4 = inlined_call_operand.vmem [shape: f32[1,16], index: 4, kind: input, shape index: {}]
  %s5 = inlined_call_operand.hbm [shape: f32[8,16], index: 5, kind: output, shape index: {}]
  %s6 = sld [smem:[#allocation0]]
  $region30: #{net_forward.1} parent=0
    _
  %s8 = ssub.s32 1, %s6
  %s9 = scalar_select 0, %s8, %s6
  $region1: #{net_forward.1} parent=0
    #allocation2 [shape = 'u8[4096]{0}', space=vmem, size = 0x1000, scoped, tag = 'output window, operand 0, single buffered']
    #allocation3 [shape = 's32[1]{0}', space=sflag, size = 0x4, scoped, tag = 'scoped memory for net_forward.1']
    %10 = vsyncpa [#allocation3], 0
    // Predicated region
    $region2: #{net_forward.1} parent=1 // pred_check
      _
    $region3: #{net_forward.1} parent=1 // pred_check_branch
      %12 = sbr.rel (0) target = $region5
    $region4: #{net_forward.1} parent=1 // pred_region
      _
    $region5: #{net_forward.1} parent=1 // pred_fallthru
      _
    // Predicated region
    $region6: #{net_forward.1} parent=1 // pred_check
      _
    $region7: #{net_forward.1} parent=1 // pred_check_branch
      %14 = sbr.rel (0) target = $region9
    $region8: #{net_forward.1} parent=1 // pred_region
      _
    $region9: #{net_forward.1} parent=1 // pred_fallthru
      _
    // Predicated region
    $region10: #{net_forward.1} parent=1 // pred_check
      _
    $region11: #{net_forward.1} parent=1 // pred_check_branch
      %16 = sbr.rel (0) target = $region13
    $region12: #{net_forward.1} parent=1 // pred_region
      _
    $region13: #{net_forward.1} parent=1 // pred_fallthru
      _
    // Predicated region
    $region14: #{net_forward.1} parent=1 // pred_check
      _
    $region15: #{net_forward.1} parent=1 // pred_check_branch
      %18 = sbr.rel (0) target = $region17
    $region16: #{net_forward.1} parent=1 // pred_region
      _
    $region17: #{net_forward.1} parent=1 // pred_fallthru
      _
    // Predicated region
    $region18: #{net_forward.1} parent=1 // pred_check
      _
    $region19: #{net_forward.1} parent=1 // pred_check_branch
      %20 = sbr.rel (0) target = $region21
    $region20: #{net_forward.1} parent=1 // pred_region
      _
    $region21: #{net_forward.1} parent=1 // pred_fallthru
      _
    %v21 = vld [vmem:[%s0] sm:$0xff]
    %v22 = vld [vmem:[%s1] sm:$0xff]
    %v23 = vld [vmem:[%s1 + $0x8] sm:$0xff]
    %v24 = vld [vmem:[%s1 + $0x10] sm:$0xff]
    %v25 = vld [vmem:[%s1 + $0x18] sm:$0xff]
    %v26 = vld [vmem:[%s2] sm:$0x1]
    %v28 = vlaneseq
    %v29 = vshrl.u32 %v28, 7
    %v30 = vsub.s32 0, %v29
    %v31 = vrot.slane %v26, %v30
    %vm33 = vcmask 261120
    %v35 = vsel %vm33, %v21, 0
    %37 = vmatprep.subr.mxu0 0.0
    %38 = vmatpush1.msra.mxu0 0.0
    %39 = vmatprep.subr.mxu0 0.0
    %40 = vmatpush1.msra.mxu0 0.0
    %41 = vmatprep.subr.mxu0 0.0
    %42 = vmatpush1.msra.mxu0 0.0
    %43 = vmatprep.subr.mxu0 0.0
    %44 = vmatpush1.msra.mxu0 0.0
    %45 = vmatprep.subr.mxu0 0.0
    %46 = vmatpush1.msra.mxu0 0.0
    %47 = vmatprep.subr.mxu0 0.0
    %48 = vmatpush1.msra.mxu0 0.0
    %49 = vmatprep.subr.mxu0 0.0
    %50 = vmatpush1.msra.mxu0 0.0
    %51 = vmatprep.subr.mxu0 0.0
    %52 = vmatpush1.msra.mxu0 0.0
    %53 = vmatprep.subr.mxu0 0.0
    %54 = vmatpush1.msra.mxu0 0.0
    %55 = vmatprep.subr.mxu0 0.0
    %56 = vmatpush1.msra.mxu0 0.0
    %57 = vmatprep.subr.mxu0 0.0
    %58 = vmatpush1.msra.mxu0 0.0
    %59 = vmatprep.subr.mxu0 0.0
    %60 = vmatpush1.msra.mxu0 0.0
    %61 = vmatprep.subr.mxu0 0.0
    %62 = vmatpush1.msra.mxu0 %v25
    %63 = vmatprep.subr.mxu0 0.0
    %64 = vmatpush1.msra.mxu0 %v24
    %65 = vmatprep.subr.mxu0 0.0
    %66 = vmatpush1.msra.mxu0 %v23
    %67 = vmatprep.subr.mxu0 0.0
    %68 = vmatpush1.msra.mxu0 %v22
    %69 = vmatprep.subr.mxu0 0.0
    %70 = vmatpush2.msra.mxu0 0.0
    %71 = vmatprep.subr.mxu0 0.0
    %72 = vmatpush2.msra.mxu0 0.0
    %73 = vmatprep.subr.mxu0 0.0
    %74 = vmatpush2.msra.mxu0 0.0
    %75 = vmatprep.subr.mxu0 0.0
    %76 = vmatpush2.msra.mxu0 0.0
    %77 = vmatprep.subr.mxu0 0.0
    %78 = vmatpush2.msra.mxu0 0.0
    %79 = vmatprep.subr.mxu0 0.0
    %80 = vmatpush2.msra.mxu0 0.0
    %81 = vmatprep.subr.mxu0 0.0
    %82 = vmatpush2.msra.mxu0 0.0
    %83 = vmatprep.subr.mxu0 0.0
    %84 = vmatpush2.msra.mxu0 0.0
    %85 = vmatprep.subr.mxu0 0.0
    %86 = vmatpush2.msra.mxu0 0.0
    %87 = vmatprep.subr.mxu0 0.0
    %88 = vmatpush2.msra.mxu0 0.0
    %89 = vmatprep.subr.mxu0 0.0
    %90 = vmatpush2.msra.mxu0 0.0
    %91 = vmatprep.subr.mxu0 0.0
    %92 = vmatpush2.msra.mxu0 0.0
    %93 = vmatprep.subr.mxu0 0.0
    %94 = vmatpush2.msra.mxu0 0.0
    %95 = vmatprep.subr.mxu0 0.0
    %96 = vmatpush2.msra.mxu0 0.0
    %97 = vmatprep.subr.mxu0 0.0
    %98 = vmatpush2.msra.mxu0 0.0
    %99 = vmatprep.subr.mxu0 0.0
    %100 = vmatpush2.msra.mxu0 0.0
    %101 = vmatprep.mubr.f32.mxu0 0.0
    %102 = vmatmul.mubr.f32.gmra.mxu0 %v35
    %v103 = vpop.f32.mrf.mxu0
    %v104 = vadd.f32 %v31, %v103
    %v105 = vpop.f32.mrf.mxu0
    %106 = vdwg.mxu0
    %v107 = vmax.f32 %v104, 0.0
    %v108 = vld [vmem:[%s3] sm:$0xff]
    %v109 = vld [vmem:[%s3 + $0x8] sm:$0xff]
    %v110 = vld [vmem:[%s3 + $0x10] sm:$0xff]
    %v111 = vld [vmem:[%s3 + $0x18] sm:$0xff]
    %v112 = vld [vmem:[%s3 + $0x20] sm:$0xff]
    %v113 = vld [vmem:[%s3 + $0x28] sm:$0xff]
    %v114 = vld [vmem:[%s3 + $0x30] sm:$0xff]
    %v115 = vld [vmem:[%s3 + $0x38] sm:$0xff]
    %v116 = vld [vmem:[%s3 + $0x40] sm:$0xff]
    %v117 = vld [vmem:[%s3 + $0x48] sm:$0xff]
    %v118 = vld [vmem:[%s3 + $0x50] sm:$0xff]
    %v119 = vld [vmem:[%s3 + $0x58] sm:$0xff]
    %v120 = vld [vmem:[%s3 + $0x60] sm:$0xff]
    %v121 = vld [vmem:[%s3 + $0x68] sm:$0xff]
    %v122 = vld [vmem:[%s3 + $0x70] sm:$0xff]
    %v123 = vld [vmem:[%s3 + $0x78] sm:$0xff]
    %v124 = vld [vmem:[%s4] sm:$0x1]
    %v126 = vlaneseq
    %v127 = vshrl.u32 %v126, 7
    %v128 = vsub.s32 0, %v127
    %v129 = vrot.slane %v124, %v128
    %131 = vmatprep.subr.mxu0 0.0
    %132 = vmatpush1.msra.mxu0 %v123
    %133 = vmatprep.subr.mxu0 0.0
    %134 = vmatpush1.msra.mxu0 %v122
    %135 = vmatprep.subr.mxu0 0.0
    %136 = vmatpush1.msra.mxu0 %v121
    %137 = vmatprep.subr.mxu0 0.0
    %138 = vmatpush1.msra.mxu0 %v120
    %139 = vmatprep.subr.mxu0 0.0
    %140 = vmatpush1.msra.mxu0 %v119
    %141 = vmatprep.subr.mxu0 0.0
    %142 = vmatpush1.msra.mxu0 %v118
    %143 = vmatprep.subr.mxu0 0.0
    %144 = vmatpush1.msra.mxu0 %v117
    %145 = vmatprep.subr.mxu0 0.0
    %146 = vmatpush1.msra.mxu0 %v116
    %147 = vmatprep.subr.mxu0 0.0
    %148 = vmatpush1.msra.mxu0 %v115
    %149 = vmatprep.subr.mxu0 0.0
    %150 = vmatpush1.msra.mxu0 %v114
    %151 = vmatprep.subr.mxu0 0.0
    %152 = vmatpush1.msra.mxu0 %v113
    %153 = vmatprep.subr.mxu0 0.0
    %154 = vmatpush1.msra.mxu0 %v112
    %155 = vmatprep.subr.mxu0 0.0
    %156 = vmatpush1.msra.mxu0 %v111
    %157 = vmatprep.subr.mxu0 0.0
    %158 = vmatpush1.msra.mxu0 %v110
    %159 = vmatprep.subr.mxu0 0.0
    %160 = vmatpush1.msra.mxu0 %v109
    %161 = vmatprep.subr.mxu0 0.0
    %162 = vmatpush1.msra.mxu0 %v108
    %163 = vmatprep.subr.mxu0 0.0
    %164 = vmatpush2.msra.mxu0 0.0
    %165 = vmatprep.subr.mxu0 0.0
    %166 = vmatpush2.msra.mxu0 0.0
    %167 = vmatprep.subr.mxu0 0.0
    %168 = vmatpush2.msra.mxu0 0.0
    %169 = vmatprep.subr.mxu0 0.0
    %170 = vmatpush2.msra.mxu0 0.0
    %171 = vmatprep.subr.mxu0 0.0
    %172 = vmatpush2.msra.mxu0 0.0
    %173 = vmatprep.subr.mxu0 0.0
    %174 = vmatpush2.msra.mxu0 0.0
    %175 = vmatprep.subr.mxu0 0.0
    %176 = vmatpush2.msra.mxu0 0.0
    %177 = vmatprep.subr.mxu0 0.0
    %178 = vmatpush2.msra.mxu0 0.0
    %179 = vmatprep.subr.mxu0 0.0
    %180 = vmatpush2.msra.mxu0 0.0
    %181 = vmatprep.subr.mxu0 0.0
    %182 = vmatpush2.msra.mxu0 0.0
    %183 = vmatprep.subr.mxu0 0.0
    %184 = vmatpush2.msra.mxu0 0.0
    %185 = vmatprep.subr.mxu0 0.0
    %186 = vmatpush2.msra.mxu0 0.0
    %187 = vmatprep.subr.mxu0 0.0
    %188 = vmatpush2.msra.mxu0 0.0
    %189 = vmatprep.subr.mxu0 0.0
    %190 = vmatpush2.msra.mxu0 0.0
    %191 = vmatprep.subr.mxu0 0.0
    %192 = vmatpush2.msra.mxu0 0.0
    %193 = vmatprep.subr.mxu0 0.0
    %194 = vmatpush2.msra.mxu0 0.0
    %195 = vmatprep.mubr.f32.mxu0 0.0
    %196 = vmatmul.mubr.f32.gmra.mxu0 %v107
    %v197 = vpop.f32.mrf.mxu0
    %v198 = vadd.f32 %v129, %v197
    %v199 = vpop.f32.mrf.mxu0
    %200 = vdwg.mxu0
    %vm201 = vcmask 130048
    %202 = vst.msk [vmem:[#allocation2] sm:$0xff] %vm201, %v198
    // Predicated region
    $region22: #{net_forward.1} parent=1 // pred_check
      _
    $region23: #{net_forward.1} parent=1 // pred_check_branch
      %204 = sbr.rel (0) target = $region25
    $region24: #{net_forward.1} parent=1 // pred_region
      %s206 = ssub.s32 128, 128
      %207 = vsyncadd [#allocation3], %s206
      %s209 = sshll.u32 [#allocation2], 4
      %s210 = int_to_ptr.vmem [resolvable:$true] %s209
      %212 = dma.vmem_to_hbm [thread:$0]  %s210, 128, %s5, [#allocation3]
    $region25: #{net_forward.1} parent=1 // pred_fallthru
      _
    // Predicated region
    $region26: #{net_forward.1} parent=1 // pred_check
      _
    $region27: #{net_forward.1} parent=1 // pred_check_branch
      %214 = sbr.rel (0) target = $region29
    $region28: #{net_forward.1} parent=1 // pred_region
      %215 = dma.done [#allocation3], 128
    $region29: #{net_forward.1} parent=1 // pred_fallthru
      _
    %216 = vsyncpa [#allocation3], 1

</llo_original>
